<compile_context>
chip_gen: v7x
topology: tpu7x:2x2x1
jax: 0.10.0
libtpu: 0.0.40
codegen_flags: <defaults>
</compile_context>

<pallas_src>
import functools
import math

import jax
import jax.numpy as jnp
from jax.experimental import pallas as pl
from jax.experimental.pallas import tpu as pltpu


def _round_up(x, m):
    return ((x + m - 1) // m) * m


def _lcm(a, b):
    return a * b // math.gcd(a, b)


def _tpu_tuning():
    """Per-generation (block byte budget, vmem_limit_bytes, low-precision-scale ok)."""
    kind = ""
    try:
        dev = jax.devices()[0]
        if dev.platform == "tpu":
            kind = dev.device_kind.lower()
    except Exception:
        pass
    if any(tag in kind for tag in ("v2", "v3")):
        # Tiny VMEM generations: stay very small.
        return 2 * 1024 * 1024, 12 * 1024 * 1024, False
    if any(tag in kind for tag in ("v4", "v5", "v6")):
        # 128 MiB physical VMEM: big blocks keep more shapes on the fused
        # (2x HBM traffic) path.  in/out double-buffered: ~4 x 20 = 80 MiB.
        block_budget = 20 * 1024 * 1024
        vmem_limit = 100 * 1024 * 1024
    else:
        # v7x (64 MiB per TensorCore) and unknown targets: conservative
        # (~4 x 8 = 32 MiB pipeline, 56 MiB scoped limit).
        block_budget = 8 * 1024 * 1024
        vmem_limit = 56 * 1024 * 1024
    # v5e / v4 have no bf16 VALU; keep the final scale multiply in f32 there.
    lowp_scale_ok = not any(tag in kind for tag in ("v4", "v5 lite", "v5e"))
    return block_budget, vmem_limit, lowp_scale_ok


# ---------------------------------------------------------------------------
# Fused kernel: pool + fc1/relu + fc2/sigmoid + scale for one (Rt, S_pad) tile.
# Rows are ordered item-major / channel-minor; Rt = items * channels.
# ---------------------------------------------------------------------------
def _se_fused_kernel(x_ref, w1_ref, b1_ref, w2_ref, b2_ref, o_ref, *,
                     items, channels, inv_s, scale_dtype):
    rt = items * channels

    # Squeeze: per-row mean over the lane (spatial) axis, accumulated in f32.
    # Zero spatial padding does not perturb the sum; inv_s uses the true S.
    pooled = jnp.sum(x_ref[...].astype(jnp.float32), axis=-1, keepdims=True) * inv_s  # (Rt, 1)
    pooled = pooled.reshape(items, channels)                                          # (items, C)

    # Excitation on the VPU: with C, Cr << 128 an MXU matmul is >97% padding and
    # adds a serialized push/pop on a short grid, so use broadcast-mul plus
    # last-axis (lane) reduces.  Weights keep their PyTorch (out, in) layout.
    h = jnp.sum(pooled[:, None, :] * w1_ref[...], axis=-1) + b1_ref[...]   # (items, Cr)
    h = jnp.maximum(h, 0.0)
    g = jnp.sum(h[:, None, :] * w2_ref[...], axis=-1) + b2_ref[...]        # (items, C)
    g = jax.nn.sigmoid(g).reshape(rt, 1)                                   # (Rt, 1)

    # Scale: re-index x_ref (cheap VMEM re-load, keeps vreg pressure low) and
    # multiply in scale_dtype (x.dtype on bf16-capable VALUs, f32 otherwise).
    o_ref[...] = (x_ref[...].astype(scale_dtype) * g.astype(scale_dtype)).astype(o_ref.dtype)


def _fused_call(x2d, w1, b1_2d, w2, b2_2d, *, rt, s_true, scale_dtype, vmem_limit):
    rows, s_pad = x2d.shape
    cr, c = w1.shape
    kernel = functools.partial(_se_fused_kernel, items=rt // c, channels=c,
                               inv_s=1.0 / float(s_true), scale_dtype=scale_dtype)
    return pl.pallas_call(
        kernel,
        out_shape=jax.ShapeDtypeStruct((rows, s_pad), x2d.dtype),
        grid_spec=pltpu.PrefetchScalarGridSpec(
            num_scalar_prefetch=0,
            grid=(pl.cdiv(rows, rt),),
            in_specs=[
                pl.BlockSpec((rt, s_pad), lambda i: (i, 0)),   # x rows (item-aligned)
                pl.BlockSpec((cr, c), lambda i: (0, 0)),       # fc1 weight (Cr, C)
                pl.BlockSpec((1, cr), lambda i: (0, 0)),       # fc1 bias
                pl.BlockSpec((c, cr), lambda i: (0, 0)),       # fc2 weight (C, Cr)
                pl.BlockSpec((1, c), lambda i: (0, 0)),        # fc2 bias
            ],
            out_specs=pl.BlockSpec((rt, s_pad), lambda i: (i, 0)),
        ),
        compiler_params=pltpu.CompilerParams(
            dimension_semantics=("parallel",),
            vmem_limit_bytes=vmem_limit,
        ),
    )(x2d, w1, b1_2d, w2, b2_2d)


# ---------------------------------------------------------------------------
# Two-pass fallback: gates in XLA, Pallas broadcast-scale over (rows, lanes).
# ---------------------------------------------------------------------------
def _se_scale_kernel(x_ref, g_ref, o_ref, *, scale_dtype):
    g = g_ref[...].astype(scale_dtype)                                     # (Rt, 1)
    o_ref[...] = (x_ref[...].astype(scale_dtype) * g).astype(o_ref.dtype)


def _two_pass_call(x2d, w1, b1_2d, w2, b2_2d, *, n_items, channels, s_true, sub,
                   block_budget, vmem_limit, scale_dtype):
    rows, s_pad = x2d.shape
    itemsize = jnp.dtype(x2d.dtype).itemsize

    # Pass 1: squeeze + tiny FCs in plain XLA.
    pooled = (jnp.sum(x2d.astype(jnp.float32), axis=-1) / float(s_true)).reshape(n_items, channels)
    h = jnp.maximum(pooled @ w1.T + b1_2d, 0.0)
    gates = jax.nn.sigmoid(h @ w2.T + b2_2d).reshape(rows, 1)              # (rows, 1) f32

    # Pass 2: Pallas scale.  Lane tile multiple of 128, row tile multiple of the
    # sublane quantum -> logical block bytes == physical VMEM bytes.
    st = s_pad
    if sub * st * itemsize > block_budget:
        st = max(128, (block_budget // (sub * itemsize * 128)) * 128)
    rt = max(sub, ((block_budget // (st * itemsize)) // sub) * sub)
    rt = min(rt, _round_up(rows, sub))

    kernel = functools.partial(_se_scale_kernel, scale_dtype=scale_dtype)
    return pl.pallas_call(
        kernel,
        out_shape=jax.ShapeDtypeStruct((rows, s_pad), x2d.dtype),
        grid_spec=pltpu.PrefetchScalarGridSpec(
            num_scalar_prefetch=0,
            grid=(pl.cdiv(rows, rt), pl.cdiv(s_pad, st)),
            in_specs=[
                pl.BlockSpec((rt, st), lambda r, s: (r, s)),
                pl.BlockSpec((rt, 1), lambda r, s: (r, 0)),
            ],
            out_specs=pl.BlockSpec((rt, st), lambda r, s: (r, s)),
        ),
        compiler_params=pltpu.CompilerParams(
            dimension_semantics=("parallel", "parallel"),
            vmem_limit_bytes=vmem_limit,
        ),
    )(x2d, gates)


# ---------------------------------------------------------------------------
# Public wrapper (matches the PyTorch module's forward).
# ---------------------------------------------------------------------------
def channel_se_layer_3d(x, w1, b1, w2, b2, *, force_two_pass=False):
    """x: (B, C, D, H, W).  w1: (Cr, C), b1: (Cr,), w2: (C, Cr), b2: (C,)."""
    B, C, D, H, W = x.shape
    S = D * H * W
    Cr = w1.shape[0]

    block_budget, vmem_limit, lowp_scale_ok = _tpu_tuning()
    itemsize = jnp.dtype(x.dtype).itemsize
    sub = max(8, 32 // itemsize)                 # sublane quantum: 8 f32 / 16 bf16 / 32 int8
    x_is_f32 = jnp.dtype(x.dtype) == jnp.dtype(jnp.float32)
    scale_dtype = x.dtype if (x_is_f32 or lowp_scale_ok) else jnp.float32

    rows = B * C
    x2d = x.reshape(rows, S)
    # Lane-dense DMA / stores: pad the spatial axis to a multiple of 128 (zeros,
    # sliced back off below; the mean divides by the true S so the pad is inert).
    # For typical SE inputs S is already a multiple of 128 and this is a no-op.
    s_pad = _round_up(S, 128)
    if s_pad != S:
        x2d = jnp.pad(x2d, ((0, 0), (0, s_pad - S)))

    w1f = jnp.asarray(w1, jnp.float32)           # (Cr, C) — PyTorch layout, no transpose
    w2f = jnp.asarray(w2, jnp.float32)           # (C, Cr)
    b1_2d = jnp.asarray(b1, jnp.float32).reshape(1, Cr)
    b2_2d = jnp.asarray(b2, jnp.float32).reshape(1, C)

    # Row-tile sizing (padding-aware): tiles are multiples of lcm(C, sub) so they
    # are item-aligned AND sublane-dense (no hidden VMEM padding factor).
    bytes_per_row = s_pad * itemsize
    group = _lcm(C, sub)

    if force_two_pass or group * bytes_per_row > block_budget:
        out2d = _two_pass_call(x2d, w1f, b1_2d, w2f, b2_2d, n_items=B, channels=C,
                               s_true=S, sub=sub, block_budget=block_budget,
                               vmem_limit=vmem_limit, scale_dtype=scale_dtype)
    else:
        max_k = max(1, block_budget // (group * bytes_per_row))
        total_groups = pl.cdiv(rows, group)
        # Aim for >=4 grid steps when the problem is big enough: keeps the DMA
        # pipeline overlapped and lets v7x's two TensorCores split the grid.
        k = max(1, min(max_k, pl.cdiv(total_groups, 4)))
        out2d = _fused_call(x2d, w1f, b1_2d, w2f, b2_2d, rt=group * k, s_true=S,
                            scale_dtype=scale_dtype, vmem_limit=vmem_limit)

    if s_pad != S:
        out2d = out2d[:, :S]
    return out2d.reshape(B, C, D, H, W)


def _reference(x, w1, b1, w2, b2):
    B, C = x.shape[0], x.shape[1]
    pooled = jnp.mean(x.reshape(B, C, -1).astype(jnp.float32), axis=-1)
    h = jnp.maximum(pooled @ jnp.asarray(w1, jnp.float32).T + b1, 0.0)
    s = jax.nn.sigmoid(h @ jnp.asarray(w2, jnp.float32).T + b2)
    return (x.astype(jnp.float32) * s.reshape(B, C, 1, 1, 1)).astype(x.dtype)


if __name__ == "__main__":
    key = jax.random.PRNGKey(0)
    kx, kw1, kb1, kw2, kb2, kx2 = jax.random.split(key, 6)

    # Module config: num_channels=4, reduction_ratio=2 -> reduced channels = 2.
    B, C, D, H, W = 2, 4, 8, 8, 8
    Cr = C // 2

    x = jax.random.normal(kx, (B, C, D, H, W), dtype=jnp.float32)
    # nn.Linear parameter shapes: weight (out, in), bias (out,).
    w1 = jax.random.normal(kw1, (Cr, C), dtype=jnp.float32) * 0.5
    b1 = jax.random.normal(kb1, (Cr,), dtype=jnp.float32) * 0.1
    w2 = jax.random.normal(kw2, (C, Cr), dtype=jnp.float32) * 0.5
    b2 = jax.random.normal(kb2, (C,), dtype=jnp.float32) * 0.1

    ref = _reference(x, w1, b1, w2, b2)

    # Fused single-pass path (default for these sizes).
    out = channel_se_layer_3d(x, w1, b1, w2, b2)
    jax.block_until_ready(out)
    assert out.shape == (B, C, D, H, W)
    assert jnp.allclose(out, ref, atol=1e-5, rtol=1e-5), "fused path mismatch"

    # Two-pass (pool-in-XLA + Pallas scale) fallback path also compiles/runs.
    out2 = channel_se_layer_3d(x, w1, b1, w2, b2, force_two_pass=True)
    jax.block_until_ready(out2)
    assert jnp.allclose(out2, ref, atol=1e-5, rtol=1e-5), "two-pass path mismatch"

    # Odd spatial size (S=100 -> padded to 128) plus a batch that leaves a
    # partial final row tile: exercises the pad/slice and grid-edge handling.
    B2, D2, H2, W2 = 3, 4, 5, 5
    x_odd = jax.random.normal(kx2, (B2, C, D2, H2, W2), dtype=jnp.float32)
    ref_odd = _reference(x_odd, w1, b1, w2, b2)
    out_odd = channel_se_layer_3d(x_odd, w1, b1, w2, b2)
    jax.block_until_ready(out_odd)
    assert jnp.allclose(out_odd, ref_odd, atol=1e-5, rtol=1e-5), "odd-shape mismatch"

    print("KERNEL_OK")
</pallas_src>

<mosaic_0001>
module attributes {stable_mosaic.version = 11 : i64} {
  func.func @_se_fused_kernel(%arg0: i32, %arg1: memref<8x512xf32, #tpu.memory_space<vmem>>, %arg2: memref<2x4xf32, #tpu.memory_space<vmem>>, %arg3: memref<1x2xf32, #tpu.memory_space<vmem>>, %arg4: memref<4x2xf32, #tpu.memory_space<vmem>>, %arg5: memref<1x4xf32, #tpu.memory_space<vmem>>, %arg6: memref<8x512xf32, #tpu.memory_space<vmem>>) attributes {dimension_semantics = [#tpu.dimension_semantics<parallel>], iteration_bounds = array<i64: 1>, scalar_prefetch = 0 : i64, scratch_operands = 0 : i64, tpu.core_type = #tpu.core_type<tc>, window_params = [{transform_indices = @transform_0, window_bounds = array<i64: 8, 512>}, {pipeline_mode = #tpu.pipeline_mode<synchronous>, transform_indices = @transform_1, window_bounds = array<i64: 2, 4>}, {pipeline_mode = #tpu.pipeline_mode<synchronous>, transform_indices = @transform_2, window_bounds = array<i64: 1, 2>}, {pipeline_mode = #tpu.pipeline_mode<synchronous>, transform_indices = @transform_3, window_bounds = array<i64: 4, 2>}, {pipeline_mode = #tpu.pipeline_mode<synchronous>, transform_indices = @transform_4, window_bounds = array<i64: 1, 4>}, {transform_indices = @transform_5, window_bounds = array<i64: 8, 512>}]} {
    %c0 = arith.constant 0 : index
    %c0_0 = arith.constant 0 : index
    %0 = vector.load %arg1[%c0, %c0_0] : memref<8x512xf32, #tpu.memory_space<vmem>>, vector<8x512xf32>
    %cst = arith.constant dense<0.000000e+00> : vector<8xf32>
    %1 = vector.multi_reduction <add>, %0, %cst [1] : vector<8x512xf32> to vector<8xf32>
    %2 = vector.shape_cast %1 : vector<8xf32> to vector<8x1xf32>
    %cst_1 = arith.constant 0.001953125 : f32
    %3 = vector.broadcast %cst_1 : f32 to vector<8x1xf32>
    %4 = arith.mulf %2, %3 : vector<8x1xf32>
    %5 = vector.shape_cast %4 : vector<8x1xf32> to vector<2x4xf32>
    %6 = vector.shape_cast %5 : vector<2x4xf32> to vector<2x1x4xf32>
    %c0_2 = arith.constant 0 : index
    %c0_3 = arith.constant 0 : index
    %7 = vector.load %arg2[%c0_2, %c0_3] : memref<2x4xf32, #tpu.memory_space<vmem>>, vector<2x4xf32>
    %8 = vector.shape_cast %7 : vector<2x4xf32> to vector<1x2x4xf32>
    %9 = vector.broadcast %6 : vector<2x1x4xf32> to vector<2x2x4xf32>
    %10 = vector.broadcast %8 : vector<1x2x4xf32> to vector<2x2x4xf32>
    %11 = arith.mulf %9, %10 : vector<2x2x4xf32>
    %cst_4 = arith.constant dense<0.000000e+00> : vector<2x2xf32>
    %12 = vector.multi_reduction <add>, %11, %cst_4 [2] : vector<2x2x4xf32> to vector<2x2xf32>
    %c0_5 = arith.constant 0 : index
    %c0_6 = arith.constant 0 : index
    %13 = vector.load %arg3[%c0_5, %c0_6] : memref<1x2xf32, #tpu.memory_space<vmem>>, vector<1x2xf32>
    %14 = vector.broadcast %13 : vector<1x2xf32> to vector<2x2xf32>
    %15 = arith.addf %12, %14 : vector<2x2xf32>
    %cst_7 = arith.constant 0.000000e+00 : f32
    %16 = vector.broadcast %cst_7 : f32 to vector<2x2xf32>
    %17 = arith.maximumf %15, %16 : vector<2x2xf32>
    %18 = vector.shape_cast %17 : vector<2x2xf32> to vector<2x1x2xf32>
    %c0_8 = arith.constant 0 : index
    %c0_9 = arith.constant 0 : index
    %19 = vector.load %arg4[%c0_8, %c0_9] : memref<4x2xf32, #tpu.memory_space<vmem>>, vector<4x2xf32>
    %20 = vector.shape_cast %19 : vector<4x2xf32> to vector<1x4x2xf32>
    %21 = vector.broadcast %18 : vector<2x1x2xf32> to vector<2x4x2xf32>
    %22 = vector.broadcast %20 : vector<1x4x2xf32> to vector<2x4x2xf32>
    %23 = arith.mulf %21, %22 : vector<2x4x2xf32>
    %cst_10 = arith.constant dense<0.000000e+00> : vector<2x4xf32>
    %24 = vector.multi_reduction <add>, %23, %cst_10 [2] : vector<2x4x2xf32> to vector<2x4xf32>
    %c0_11 = arith.constant 0 : index
    %c0_12 = arith.constant 0 : index
    %25 = vector.load %arg5[%c0_11, %c0_12] : memref<1x4xf32, #tpu.memory_space<vmem>>, vector<1x4xf32>
    %26 = vector.broadcast %25 : vector<1x4xf32> to vector<2x4xf32>
    %27 = arith.addf %24, %26 : vector<2x4xf32>
    %28 = arith.negf %27 : vector<2x4xf32>
    %29 = math.exp %28 : vector<2x4xf32>
    %cst_13 = arith.constant 1.000000e+00 : f32
    %30 = vector.broadcast %cst_13 : f32 to vector<2x4xf32>
    %31 = arith.addf %30, %29 : vector<2x4xf32>
    %32 = arith.divf %30, %31 : vector<2x4xf32>
    %33 = vector.shape_cast %32 : vector<2x4xf32> to vector<8x1xf32>
    %c0_14 = arith.constant 0 : index
    %c0_15 = arith.constant 0 : index
    %34 = vector.load %arg1[%c0_14, %c0_15] : memref<8x512xf32, #tpu.memory_space<vmem>>, vector<8x512xf32>
    %35 = vector.broadcast %33 : vector<8x1xf32> to vector<8x512xf32>
    %36 = arith.mulf %34, %35 : vector<8x512xf32>
    %c0_16 = arith.constant 0 : index
    %c0_17 = arith.constant 0 : index
    %37 = vector.load %arg6[%c0_16, %c0_17] : memref<8x512xf32, #tpu.memory_space<vmem>>, vector<8x512xf32>
    tpu.vector_store %arg6[%c0_16, %c0_17], %36 {strides = array<i32>} : memref<8x512xf32, #tpu.memory_space<vmem>>, vector<8x512xf32>,
    return
  }
  func.func @transform_0(%arg0: i32) -> (i32, i32) {
    %c0_i32 = arith.constant 0 : i32
    %c0_i32_0 = arith.constant 0 : i32
    return %arg0, %c0_i32 : i32, i32
  }
  func.func @transform_1(%arg0: i32) -> (i32, i32) {
    %c0_i32 = arith.constant 0 : i32
    %c0_i32_0 = arith.constant 0 : i32
    %c0_i32_1 = arith.constant 0 : i32
    return %c0_i32, %c0_i32_0 : i32, i32
  }
  func.func @transform_2(%arg0: i32) -> (i32, i32) {
    %c0_i32 = arith.constant 0 : i32
    %c0_i32_0 = arith.constant 0 : i32
    %c0_i32_1 = arith.constant 0 : i32
    return %c0_i32, %c0_i32_0 : i32, i32
  }
  func.func @transform_3(%arg0: i32) -> (i32, i32) {
    %c0_i32 = arith.constant 0 : i32
    %c0_i32_0 = arith.constant 0 : i32
    %c0_i32_1 = arith.constant 0 : i32
    return %c0_i32, %c0_i32_0 : i32, i32
  }
  func.func @transform_4(%arg0: i32) -> (i32, i32) {
    %c0_i32 = arith.constant 0 : i32
    %c0_i32_0 = arith.constant 0 : i32
    %c0_i32_1 = arith.constant 0 : i32
    return %c0_i32, %c0_i32_0 : i32, i32
  }
  func.func @transform_5(%arg0: i32) -> (i32, i32) {
    %c0_i32 = arith.constant 0 : i32
    %c0_i32_0 = arith.constant 0 : i32
    return %arg0, %c0_i32 : i32, i32
  }
}

</mosaic_0001>

<llo_original>
// kernel: tpu_custom_call.1
$region0: #{tpu_custom_call.1}
  #allocation0 [shape = 'u32[]', space=smem, size = 0x4, offset = 0x4, fixed_abs, tag = 'smem constant byte address 0x4 - core index']
  #allocation1 [shape = 'u32[144,128]{1,0:T(1,128)}', space=vmem, size = 0x12000, scoped, tag = 'internal scratch']
  %s0 = inlined_call_operand.hbm [shape: f32[8,512], index: 0, kind: input, shape index: {}]
  %s1 = inlined_call_operand.vmem [shape: f32[2,4], index: 1, kind: input, shape index: {}]
  %s2 = inlined_call_operand.vmem [shape: f32[1,2], index: 2, kind: input, shape index: {}]
  %s3 = inlined_call_operand.vmem [shape: f32[4,2], index: 3, kind: input, shape index: {}]
  %s4 = inlined_call_operand.vmem [shape: f32[1,4], index: 4, kind: input, shape index: {}]
  %s5 = inlined_call_operand.hbm [shape: f32[8,512], index: 5, kind: output, shape index: {}]
  %s6 = sld [smem:[#allocation0]]
  $region34: #{tpu_custom_call.1} parent=0
    _
  %s8 = ssub.s32 1, %s6
  %s9 = scalar_select 0, %s8, %s6
  $region1: #{tpu_custom_call.1} parent=0
    #allocation2 [shape = 'u8[16384]{0}', space=vmem, size = 0x4000, scoped, tag = 'input window, operand 0, single buffered']
    #allocation3 [shape = 's32[1]{0}', space=sflag, size = 0x4, scoped, tag = 'scoped memory for tpu_custom_call.1']
    #allocation4 [shape = 's32[1]{0}', space=sflag, size = 0x4, scoped, tag = 'scoped memory for tpu_custom_call.1']
    #allocation5 [shape = 'u8[16384]{0}', space=vmem, size = 0x4000, scoped, tag = 'output window, operand 0, single buffered']
    %10 = vsyncpa [#allocation3], 0
    %11 = vsyncpa [#allocation4], 0
    // Predicated region
    $region2: #{tpu_custom_call.1} parent=1 // pred_check
      _
    $region3: #{tpu_custom_call.1} parent=1 // pred_check_branch
      %13 = sbr.rel (0) target = $region5
    $region4: #{tpu_custom_call.1} parent=1 // pred_region
      %s15 = ssub.s32 512, 512
      %16 = vsyncadd [#allocation3], %s15
      %s18 = sshll.u32 [#allocation2], 4
      %s19 = int_to_ptr.vmem [resolvable:$true] %s18
      %21 = dma.hbm_to_vmem [thread:$0]  %s0, 512, %s19, [#allocation3]
    $region5: #{tpu_custom_call.1} parent=1 // pred_fallthru
      _
    // Predicated region
    $region6: #{tpu_custom_call.1} parent=1 // pred_check
      _
    $region7: #{tpu_custom_call.1} parent=1 // pred_check_branch
      %23 = sbr.rel (0) target = $region9
    $region8: #{tpu_custom_call.1} parent=1 // pred_region
      _
    $region9: #{tpu_custom_call.1} parent=1 // pred_fallthru
      _
    // Predicated region
    $region10: #{tpu_custom_call.1} parent=1 // pred_check
      _
    $region11: #{tpu_custom_call.1} parent=1 // pred_check_branch
      %25 = sbr.rel (0) target = $region13
    $region12: #{tpu_custom_call.1} parent=1 // pred_region
      _
    $region13: #{tpu_custom_call.1} parent=1 // pred_fallthru
      _
    // Predicated region
    $region14: #{tpu_custom_call.1} parent=1 // pred_check
      _
    $region15: #{tpu_custom_call.1} parent=1 // pred_check_branch
      %27 = sbr.rel (0) target = $region17
    $region16: #{tpu_custom_call.1} parent=1 // pred_region
      _
    $region17: #{tpu_custom_call.1} parent=1 // pred_fallthru
      _
    // Predicated region
    $region18: #{tpu_custom_call.1} parent=1 // pred_check
      _
    $region19: #{tpu_custom_call.1} parent=1 // pred_check_branch
      %29 = sbr.rel (0) target = $region21
    $region20: #{tpu_custom_call.1} parent=1 // pred_region
      _
    $region21: #{tpu_custom_call.1} parent=1 // pred_fallthru
      _
    // Predicated region
    $region22: #{tpu_custom_call.1} parent=1 // pred_check
      _
    $region23: #{tpu_custom_call.1} parent=1 // pred_check_branch
      %31 = sbr.rel (0) target = $region25
    $region24: #{tpu_custom_call.1} parent=1 // pred_region
      %32 = dma.done [#allocation3], 512
    $region25: #{tpu_custom_call.1} parent=1 // pred_fallthru
      _
    %v33 = vld [vmem:[#allocation2] sm:$0xff]
    %v34 = vld [vmem:[#allocation2 + $0x8] sm:$0xff]
    %v35 = vld [vmem:[#allocation2 + $0x10] sm:$0xff]
    %v36 = vld [vmem:[#allocation2 + $0x18] sm:$0xff]
    %v37 = vadd.f32 %v33, %v34
    %v38 = vadd.f32 %v37, %v35
    %v39 = vadd.f32 %v38, %v36
    %40 = vadd.xlane.f32.xlu0 %v39
    %v41 = vpop.xlane.xlu0 %40
    %v42 = vmul.f32 %v41, 0.001953125
    %v45 = vunpack.c.l.s4 839922192
    %v46 = vunpack.c.0.s8 %v45
    %v47 = vlaneseq
    %v48 = vshrl.u32 %v47, 7
    %v49 = vsub.s32 %v46, %v48
    %v50 = vrot.slane %v42, %v49
    %v52 = vunpack.c.l.s4 1985246804
    %v53 = vunpack.c.0.s8 %v52
    %v54 = vlaneseq
    %v55 = vshrl.u32 %v54, 7
    %v56 = vsub.s32 %v53, %v55
    %v57 = vrot.slane %v42, %v56
    %v60 = vld [vmem:[%s1] sm:$0x3]
    %v62 = vlaneseq
    %v63 = vshrl.u32 %v62, 7
    %v64 = vsub.s32 0, %v63
    %v65 = vrot.slane %v60, %v64
    %67 = vbcast.lane.b32.xlu0 %v65, 256
    %v68 = vpop.permute.xlu0 %67
    %v69 = vlaneseq
    %v70 = vshrl.u32 %v69, 7
    %v71 = vsub.s32 1, %v70
    %v72 = vrot.slane %v60, %v71
    %74 = vbcast.lane.b32.xlu0 %v72, 256
    %v75 = vpop.permute.xlu0 %74
    %v78 = vmul.f32 %v50, %v68
    %v79 = vmul.f32 %v50, %v75
    %v80 = vmul.f32 %v57, %v68
    %v81 = vmul.f32 %v57, %v75
    %86 = vset.pattern.permute.xlu0 0
    %87 = vperm.xlu0 %86, %v78
    %v88 = vpop.permute.xlu0 %87
    %89 = vset.pattern.permute.xlu0 0
    %90 = vperm.xlu0 %89, %v79
    %v91 = vpop.permute.xlu0 %90
    %92 = vset.pattern.permute.xlu0 0
    %93 = vperm.xlu0 %92, %v80
    %v94 = vpop.permute.xlu0 %93
    %95 = vset.pattern.permute.xlu0 0
    %96 = vperm.xlu0 %95, %v81
    %v97 = vpop.permute.xlu0 %96
    %v98 = vlaneseq
    %v99 = vand.u32 %v98, 127
    %v100 = vlaneseq
    %v101 = vshrl.u32 %v100, 7
    %v102 = vsub.s32 %v99, %v101
    %v103 = vrot.slane %v88, %v102
    %v104 = vlaneseq
    %v105 = vshrl.u32 %v104, 7
    %v106 = vsub.s32 %v99, %v105
    %v107 = vrot.slane %v91, %v106
    %v108 = vlaneseq
    %v109 = vshrl.u32 %v108, 7
    %v110 = vsub.s32 %v99, %v109
    %v111 = vrot.slane %v94, %v110
    %v112 = vlaneseq
    %v113 = vshrl.u32 %v112, 7
    %v114 = vsub.s32 %v99, %v113
    %v115 = vrot.slane %v97, %v114
    %vm116 = vcmask 1041409
    %v117 = vsel %vm116, %v107, %v103
    %v118 = vsel %vm116, %v115, %v111
    %vm121 = vcmask 25600
    %v122 = vsel %vm121, %v117, 0.0
    %123 = vadd.xlane.f32.xlu0 %v122
    %v124 = vpop.xlane.xlu0 %123
    %v125 = vsel %vm121, %v118, 0.0
    %126 = vadd.xlane.f32.xlu0 %v125
    %v127 = vpop.xlane.xlu0 %126
    %v128 = vld [vmem:[%s2] sm:$0x1]
    %v130 = vlaneseq
    %v131 = vshrl.u32 %v130, 7
    %v132 = vsub.s32 0, %v131
    %v133 = vrot.slane %v128, %v132
    %135 = vbcast.lane.b32.xlu0 %v133, 256
    %v136 = vpop.permute.xlu0 %135
    %v138 = vadd.f32 %v124, %v136
    %v139 = vadd.f32 %v127, %v136
    %v140 = vmax.f32 %v138, 0.0
    %v141 = vmax.f32 %v139, 0.0
    %v142 = vld [vmem:[%s3] sm:$0xf]
    %v144 = vlaneseq
    %v145 = vshrl.u32 %v144, 7
    %v146 = vsub.s32 0, %v145
    %v147 = vrot.slane %v142, %v146
    %149 = vbcast.lane.b32.xlu0 %v147, 256
    %v150 = vpop.permute.xlu0 %149
    %v151 = vlaneseq
    %v152 = vshrl.u32 %v151, 7
    %v153 = vsub.s32 1, %v152
    %v154 = vrot.slane %v142, %v153
    %156 = vbcast.lane.b32.xlu0 %v154, 256
    %v157 = vpop.permute.xlu0 %156
    %v158 = vlaneseq
    %v159 = vshrl.u32 %v158, 7
    %v160 = vsub.s32 2, %v159
    %v161 = vrot.slane %v142, %v160
    %163 = vbcast.lane.b32.xlu0 %v161, 256
    %v164 = vpop.permute.xlu0 %163
    %v165 = vlaneseq
    %v166 = vshrl.u32 %v165, 7
    %v167 = vsub.s32 3, %v166
    %v168 = vrot.slane %v142, %v167
    %170 = vbcast.lane.b32.xlu0 %v168, 256
    %v171 = vpop.permute.xlu0 %170
    %v176 = vmul.f32 %v140, %v150
    %v177 = vmul.f32 %v140, %v157
    %v178 = vmul.f32 %v140, %v164
    %v179 = vmul.f32 %v140, %v171
    %v180 = vmul.f32 %v141, %v150
    %v181 = vmul.f32 %v141, %v157
    %v182 = vmul.f32 %v141, %v164
    %v183 = vmul.f32 %v141, %v171
    %192 = vset.pattern.permute.xlu0 0
    %193 = vperm.xlu0 %192, %v176
    %v194 = vpop.permute.xlu0 %193
    %195 = vset.pattern.permute.xlu0 0
    %196 = vperm.xlu0 %195, %v177
    %v197 = vpop.permute.xlu0 %196
    %198 = vset.pattern.permute.xlu0 0
    %199 = vperm.xlu0 %198, %v178
    %v200 = vpop.permute.xlu0 %199
    %201 = vset.pattern.permute.xlu0 0
    %202 = vperm.xlu0 %201, %v179
    %v203 = vpop.permute.xlu0 %202
    %204 = vset.pattern.permute.xlu0 0
    %205 = vperm.xlu0 %204, %v180
    %v206 = vpop.permute.xlu0 %205
    %207 = vset.pattern.permute.xlu0 0
    %208 = vperm.xlu0 %207, %v181
    %v209 = vpop.permute.xlu0 %208
    %210 = vset.pattern.permute.xlu0 0
    %211 = vperm.xlu0 %210, %v182
    %v212 = vpop.permute.xlu0 %211
    %213 = vset.pattern.permute.xlu0 0
    %214 = vperm.xlu0 %213, %v183
    %v215 = vpop.permute.xlu0 %214
    %v216 = vlaneseq
    %v217 = vshrl.u32 %v216, 7
    %v218 = vsub.s32 %v99, %v217
    %v219 = vrot.slane %v194, %v218
    %v220 = vlaneseq
    %v221 = vshrl.u32 %v220, 7
    %v222 = vsub.s32 %v99, %v221
    %v223 = vrot.slane %v197, %v222
    %v224 = vlaneseq
    %v225 = vshrl.u32 %v224, 7
    %v226 = vsub.s32 %v99, %v225
    %v227 = vrot.slane %v200, %v226
    %v228 = vlaneseq
    %v229 = vshrl.u32 %v228, 7
    %v230 = vsub.s32 %v99, %v229
    %v231 = vrot.slane %v203, %v230
    %v232 = vlaneseq
    %v233 = vshrl.u32 %v232, 7
    %v234 = vsub.s32 %v99, %v233
    %v235 = vrot.slane %v206, %v234
    %v236 = vlaneseq
    %v237 = vshrl.u32 %v236, 7
    %v238 = vsub.s32 %v99, %v237
    %v239 = vrot.slane %v209, %v238
    %v240 = vlaneseq
    %v241 = vshrl.u32 %v240, 7
    %v242 = vsub.s32 %v99, %v241
    %v243 = vrot.slane %v212, %v242
    %v244 = vlaneseq
    %v245 = vshrl.u32 %v244, 7
    %v246 = vsub.s32 %v99, %v245
    %v247 = vrot.slane %v215, %v246
    %v248 = vsel %vm116, %v223, %v219
    %vm249 = vcmask 1042434
    %v250 = vsel %vm249, %v227, %v248
    %vm251 = vcmask 1043459
    %v252 = vsel %vm251, %v231, %v250
    %v253 = vsel %vm116, %v239, %v235
    %v254 = vsel %vm249, %v243, %v253
    %v255 = vsel %vm251, %v247, %v254
    %vm258 = vcmask 11264
    %v259 = vsel %vm258, %v252, 0.0
    %260 = vadd.xlane.f32.xlu0 %v259
    %v261 = vpop.xlane.xlu0 %260
    %v262 = vsel %vm258, %v255, 0.0
    %263 = vadd.xlane.f32.xlu0 %v262
    %v264 = vpop.xlane.xlu0 %263
    %v265 = vld [vmem:[%s4] sm:$0x1]
    %v267 = vlaneseq
    %v268 = vshrl.u32 %v267, 7
    %v269 = vsub.s32 0, %v268
    %v270 = vrot.slane %v265, %v269
    %272 = vbcast.lane.b32.xlu0 %v270, 256
    %v273 = vpop.permute.xlu0 %272
    %v275 = vadd.f32 %v261, %v273
    %v276 = vadd.f32 %v264, %v273
    %v277 = vxor.u32 %v275, 2147483648
    %v278 = vxor.u32 %v276, 2147483648
    %v279 = vmul.f32 %v277, 1.442695
    %v280 = vpow.pop %v279
    %v281 = vmul.f32 %v278, 1.442695
    %v282 = vpow.pop %v281
    %v283 = vadd.f32 %v280, 1.0
    %v284 = vadd.f32 %v282, 1.0
    %v285 = vrcp.pop %v283
    %v286 = vmul.f32 1.0, %v285
    %v287 = vrcp.pop %v284
    %v288 = vmul.f32 1.0, %v287
    %290 = vset.pattern.permute.xlu0 0
    %291 = vperm.xlu0 %290, %v286
    %v292 = vpop.permute.xlu0 %291
    %v295 = vunpack.c.l.s4 839922192
    %v296 = vunpack.c.0.s8 %v295
    %v297 = vlaneseq
    %v298 = vshrl.u32 %v297, 7
    %v299 = vsub.s32 %v296, %v298
    %v300 = vrot.slane %v292, %v299
    %302 = vset.pattern.permute.xlu0 0
    %303 = vperm.xlu0 %302, %v288
    %v304 = vpop.permute.xlu0 %303
    %v307 = vunpack.c.l.s4 839922192
    %v308 = vunpack.c.0.s8 %v307
    %v309 = vlaneseq
    %v310 = vshrl.u32 %v309, 7
    %v311 = vsub.s32 %v308, %v310
    %v312 = vrot.slane %v304, %v311
    %v315 = vcombine.low %v300, %v312
    %v316 = vcombine.high %v300, %v312
    %v319 = vmul.f32 %v33, %v315
    %v320 = vmul.f32 %v34, %v316
    %v321 = vmul.f32 %v35, %v315
    %v322 = vmul.f32 %v36, %v316
    %323 = vst [vmem:[#allocation5] sm:$0xff] %v319
    %324 = vst [vmem:[#allocation5 + $0x8] sm:$0xff] %v320
    %325 = vst [vmem:[#allocation5 + $0x10] sm:$0xff] %v321
    %326 = vst [vmem:[#allocation5 + $0x18] sm:$0xff] %v322
    // Predicated region
    $region26: #{tpu_custom_call.1} parent=1 // pred_check
      _
    $region27: #{tpu_custom_call.1} parent=1 // pred_check_branch
      %328 = sbr.rel (0) target = $region29
    $region28: #{tpu_custom_call.1} parent=1 // pred_region
      %s330 = ssub.s32 512, 512
      %331 = vsyncadd [#allocation4], %s330
      %s333 = sshll.u32 [#allocation5], 4
      %s334 = int_to_ptr.vmem [resolvable:$true] %s333
      %336 = dma.vmem_to_hbm [thread:$0]  %s334, 512, %s5, [#allocation4]
    $region29: #{tpu_custom_call.1} parent=1 // pred_fallthru
      _
    // Predicated region
    $region30: #{tpu_custom_call.1} parent=1 // pred_check
      _
    $region31: #{tpu_custom_call.1} parent=1 // pred_check_branch
      %338 = sbr.rel (0) target = $region33
    $region32: #{tpu_custom_call.1} parent=1 // pred_region
      %339 = dma.done [#allocation4], 512
    $region33: #{tpu_custom_call.1} parent=1 // pred_fallthru
      _
    %340 = vsyncpa [#allocation3], 1
    %341 = vsyncpa [#allocation4], 1

</llo_original>
